<compile_context>
chip_gen: v6e
topology: v6e:2x2x1
jax: 0.10.0
libtpu: 0.0.40
codegen_flags: <defaults>
</compile_context>

<pallas_src>
import math

import jax
import jax.numpy as jnp
from jax import lax
from jax.experimental import pallas as pl
from jax.experimental.pallas import tpu as pltpu


# ----------------------------------------------------------------------------
# Specialized path: the whole kv axis fits in one tile (no online softmax).
# ----------------------------------------------------------------------------
def _sdpa_single_shot_kernel(q_ref, k_ref, v_ref, mask_ref, o_ref):
    # blocks: q/k/v/o (bb, S, D), mask (1, S, S)
    d = q_ref.shape[-1]
    inv_sqrt_d = 1.0 / math.sqrt(d)

    # Fold 1/sqrt(d) into q (S*D elements, not S*S), then feed the MXU in bf16.
    q = (q_ref[...].astype(jnp.float32) * inv_sqrt_d).astype(jnp.bfloat16)  # (bb,S,D)
    k = k_ref[...].astype(jnp.bfloat16)                                      # (bb,S,D)
    v = v_ref[...].astype(jnp.bfloat16)                                      # (bb,S,D)

    # s = q @ k^T (contract last dims, batched over bb) -- no explicit transpose.
    s = lax.dot_general(
        q, k,
        dimension_numbers=(((2,), (2,)), ((0,), (0,))),
        preferred_element_type=jnp.float32,
    )                                                                        # (bb,S,S)
    s = s + mask_ref[...].astype(jnp.float32)                                # bcast over bb

    m = jnp.max(s, axis=-1, keepdims=True)
    p = jnp.exp(s - m)
    l = jnp.sum(p, axis=-1, keepdims=True)

    pv = lax.dot_general(
        p.astype(jnp.bfloat16), v,
        dimension_numbers=(((2,), (1,)), ((0,), (0,))),
        preferred_element_type=jnp.float32,
    )                                                                        # (bb,S,D)
    # Deferred normalization, reciprocal on the EUP slot.
    o_ref[...] = (pv * pl.reciprocal(l, approx=True)).astype(o_ref.dtype)


# ----------------------------------------------------------------------------
# Generic path: tiled flash attention with online softmax (large S).
# ----------------------------------------------------------------------------
def _flash_attn_kernel(q_ref, kt_ref, v_ref, mask_ref, o_ref,
                       q_sc, m_sc, l_sc, acc_sc):
    # blocks: q (bb, tq, D), kt (bb, D, tk), v (bb, tk, D), mask (1, tq, tk)
    kv_step = pl.program_id(2)

    @pl.when(kv_step == 0)
    def _():
        inv_sqrt_d = 1.0 / math.sqrt(q_ref.shape[-1])
        # Hoisted out of the kv loop: q block is resident across ki, so scale + cast once.
        q_sc[...] = (q_ref[...].astype(jnp.float32) * inv_sqrt_d).astype(jnp.bfloat16)
        m_sc[...] = jnp.full_like(m_sc, -jnp.inf)
        l_sc[...] = jnp.zeros_like(l_sc)
        acc_sc[...] = jnp.zeros_like(acc_sc)

    q = q_sc[...]                                                            # bf16
    kt = kt_ref[...]                                                         # bf16 (bb,D,tk)
    v = v_ref[...]                                                           # bf16 (bb,tk,D)

    # s = q @ k^T with K already transposed in the wrapper -> natural K-major layout.
    s = lax.dot_general(
        q, kt,
        dimension_numbers=(((2,), (1,)), ((0,), (0,))),
        preferred_element_type=jnp.float32,
    )                                                                        # (bb,tq,tk)
    s = s + mask_ref[...].astype(jnp.float32)

    m_prev = m_sc[...]
    m_new = jnp.maximum(m_prev, jnp.max(s, axis=-1, keepdims=True))
    alpha = jnp.exp(m_prev - m_new)
    p = jnp.exp(s - m_new)

    l_sc[...] = alpha * l_sc[...] + jnp.sum(p, axis=-1, keepdims=True)
    pv = lax.dot_general(
        p.astype(jnp.bfloat16), v,
        dimension_numbers=(((2,), (1,)), ((0,), (0,))),
        preferred_element_type=jnp.float32,
    )                                                                        # (bb,tq,D)
    acc_sc[...] = alpha * acc_sc[...] + pv
    m_sc[...] = m_new

    @pl.when(kv_step == pl.num_programs(2) - 1)
    def _():
        inv_l = pl.reciprocal(l_sc[...], approx=True)
        o_ref[...] = (acc_sc[...] * inv_l).astype(o_ref.dtype)


# ----------------------------------------------------------------------------
# Wrappers
# ----------------------------------------------------------------------------
_SINGLE_SHOT_MAX_S = 512  # beyond this, switch to the tiled flash path


def _choose_bb(B, S):
    """Batches grouped per grid step.  Keep >= 2 parallel grid steps whenever
    B >= 2 so a dual-TensorCore chip (v7x) can shard the 'parallel' batch axis;
    only group when B is large enough that grouping still leaves 2 steps."""
    if B < 2 or S > 128:
        return 1
    for cand in (8, 4, 2):
        if B % cand == 0 and B // cand >= 2:
            return cand
    return 1


def _pick_tile(S):
    for t in (512, 256, 128):
        if S % t == 0:
            return t
    return S


def _sdpa_single_shot(k2, v2, q, mask):
    B, S, D = q.shape
    bb = _choose_bb(B, S)
    grid = (B // bb,)

    grid_spec = pltpu.PrefetchScalarGridSpec(
        num_scalar_prefetch=0,
        grid=grid,
        in_specs=[
            pl.BlockSpec((bb, S, D), lambda b: (b, 0, 0)),   # q
            pl.BlockSpec((bb, S, D), lambda b: (b, 0, 0)),   # k2
            pl.BlockSpec((bb, S, D), lambda b: (b, 0, 0)),   # v2
            pl.BlockSpec((1, S, S), lambda b: (0, 0, 0)),    # mask (bcast over batch)
        ],
        out_specs=pl.BlockSpec((bb, S, D), lambda b: (b, 0, 0)),
    )
    return pl.pallas_call(
        _sdpa_single_shot_kernel,
        out_shape=jax.ShapeDtypeStruct((B, S, D), q.dtype),
        grid_spec=grid_spec,
        compiler_params=pltpu.CompilerParams(dimension_semantics=("parallel",)),
    )(q, k2, v2, mask)


def _sdpa_flash(k2, v2, q, mask, *, tile):
    B, S, D = q.shape
    assert S % tile == 0, "kv tile must divide S"
    tq = tk = tile
    bb = 1

    # K pre-transposed to (B, D, S) -> QK contraction in natural layout (tk on lanes);
    # K/V/mask are the per-kv-step re-fetched streams, so send them as bf16.
    kt = jnp.swapaxes(k2, -1, -2).astype(jnp.bfloat16)
    v_b = v2.astype(jnp.bfloat16)
    mask_b = mask if mask.dtype == jnp.bfloat16 else mask.astype(jnp.bfloat16)

    grid = (B // bb, S // tq, S // tk)
    grid_spec = pltpu.PrefetchScalarGridSpec(
        num_scalar_prefetch=0,
        grid=grid,
        in_specs=[
            pl.BlockSpec((bb, tq, D), lambda b, qi, ki: (b, qi, 0)),   # q (resident over ki)
            pl.BlockSpec((bb, D, tk), lambda b, qi, ki: (b, 0, ki)),   # k^T
            pl.BlockSpec((bb, tk, D), lambda b, qi, ki: (b, ki, 0)),   # v
            pl.BlockSpec((1, tq, tk), lambda b, qi, ki: (0, qi, ki)),  # mask
        ],
        out_specs=pl.BlockSpec((bb, tq, D), lambda b, qi, ki: (b, qi, 0)),
        scratch_shapes=[
            pltpu.VMEM((bb, tq, D), jnp.bfloat16),   # scaled q (hoisted out of kv loop)
            pltpu.VMEM((bb, tq, 1), jnp.float32),    # running max m
            pltpu.VMEM((bb, tq, 1), jnp.float32),    # running denom l
            pltpu.VMEM((bb, tq, D), jnp.float32),    # output accumulator
        ],
    )
    return pl.pallas_call(
        _flash_attn_kernel,
        out_shape=jax.ShapeDtypeStruct((B, S, D), q.dtype),
        grid_spec=grid_spec,
        compiler_params=pltpu.CompilerParams(
            dimension_semantics=("parallel", "parallel", "arbitrary"),
        ),
    )(q, kt, v_b, mask_b)


def sdpa_pallas(k2, v2, q, mask, *, kv_tile=None):
    """q, k2, v2: (B, S, D); mask: (1, S, S) additive mask.  Returns (B, S, D)."""
    B, S, D = q.shape
    assert k2.shape == (B, S, D) and v2.shape == (B, S, D)
    assert mask.shape == (1, S, S)

    if kv_tile is None:
        kv_tile = S if S <= _SINGLE_SHOT_MAX_S else _pick_tile(S)

    if kv_tile >= S:
        return _sdpa_single_shot(k2, v2, q, mask)
    return _sdpa_flash(k2, v2, q, mask, tile=kv_tile)


def sdpa_ref(k2, v2, q, mask):
    qk = jnp.einsum("bsd,btd->bst", q, k2) / math.sqrt(q.shape[-1])
    qk = qk + mask
    attn = jax.nn.softmax(qk, axis=-1)
    return jnp.einsum("bst,btd->bsd", attn, v2)


if __name__ == "__main__":
    key = jax.random.PRNGKey(0)
    kq, kk, kvv, km = jax.random.split(key, 4)

    # Shapes implied by the module: mask is (1, 56, 56) -> S = 56.
    B, S, D = 2, 56, 32
    q = jax.random.normal(kq, (B, S, D), dtype=jnp.float32)
    k2 = jax.random.normal(kk, (B, S, D), dtype=jnp.float32)
    v2 = jax.random.normal(kvv, (B, S, D), dtype=jnp.float32)
    mask = jnp.where(jax.random.uniform(km, (1, S, S)) > 0.7, -1e9, 0.0).astype(jnp.float32)

    out = sdpa_pallas(k2, v2, q, mask)         # single-kv-tile specialized path
    jax.block_until_ready(out)

    ref = sdpa_ref(k2, v2, q, mask)
    assert out.shape == (B, S, D)
    max_err = float(jnp.max(jnp.abs(out - ref)))
    # bf16 MXU operands + approx reciprocal -> relaxed tolerance vs f32 reference
    assert jnp.allclose(out, ref, atol=2e-2, rtol=2e-2), f"single-shot mismatch (max err {max_err})"

    # Smoke-test the generic multi-kv-tile flash path as well (not the module's
    # shape; forces kv_tile < S to exercise the online-softmax code path).
    S2 = 256
    q2 = jax.random.normal(kq, (B, S2, D), dtype=jnp.float32)
    k22 = jax.random.normal(kk, (B, S2, D), dtype=jnp.float32)
    v22 = jax.random.normal(kvv, (B, S2, D), dtype=jnp.float32)
    mask2 = jnp.where(jax.random.uniform(km, (1, S2, S2)) > 0.7, -1e9, 0.0).astype(jnp.float32)
    out2 = sdpa_pallas(k22, v22, q2, mask2, kv_tile=128)
    jax.block_until_ready(out2)
    ref2 = sdpa_ref(k22, v22, q2, mask2)
    max_err2 = float(jnp.max(jnp.abs(out2 - ref2)))
    assert jnp.allclose(out2, ref2, atol=3e-2, rtol=3e-2), f"flash mismatch (max err {max_err2})"

    print("KERNEL_OK")
</pallas_src>

<mosaic_0001>
module attributes {stable_mosaic.version = 11 : i64} {
  func.func @_sdpa_single_shot_kernel(%arg0: i32, %arg1: memref<1x56x32xf32, #tpu.memory_space<vmem>>, %arg2: memref<1x56x32xf32, #tpu.memory_space<vmem>>, %arg3: memref<1x56x32xf32, #tpu.memory_space<vmem>>, %arg4: memref<1x56x56xf32, #tpu.memory_space<vmem>>, %arg5: memref<1x56x32xf32, #tpu.memory_space<vmem>>) attributes {dimension_semantics = [#tpu.dimension_semantics<parallel>], iteration_bounds = array<i64: 2>, scalar_prefetch = 0 : i64, scratch_operands = 0 : i64, tpu.core_type = #tpu.core_type<tc>, window_params = [{transform_indices = @transform_0, window_bounds = array<i64: 1, 56, 32>}, {transform_indices = @transform_1, window_bounds = array<i64: 1, 56, 32>}, {transform_indices = @transform_2, window_bounds = array<i64: 1, 56, 32>}, {pipeline_mode = #tpu.pipeline_mode<synchronous>, transform_indices = @transform_3, window_bounds = array<i64: 1, 56, 56>}, {transform_indices = @transform_4, window_bounds = array<i64: 1, 56, 32>}]} {
    %c0 = arith.constant 0 : index
    %c0_0 = arith.constant 0 : index
    %c0_1 = arith.constant 0 : index
    %0 = vector.load %arg1[%c0, %c0_0, %c0_1] : memref<1x56x32xf32, #tpu.memory_space<vmem>>, vector<1x56x32xf32>
    %cst = arith.constant 0.176776692 : f32
    %1 = vector.broadcast %cst : f32 to vector<1x56x32xf32>
    %2 = arith.mulf %0, %1 : vector<1x56x32xf32>
    %3 = arith.truncf %2 : vector<1x56x32xf32> to vector<1x56x32xbf16>
    %c0_2 = arith.constant 0 : index
    %c0_3 = arith.constant 0 : index
    %c0_4 = arith.constant 0 : index
    %4 = vector.load %arg2[%c0_2, %c0_3, %c0_4] : memref<1x56x32xf32, #tpu.memory_space<vmem>>, vector<1x56x32xf32>
    %5 = arith.truncf %4 : vector<1x56x32xf32> to vector<1x56x32xbf16>
    %c0_5 = arith.constant 0 : index
    %c0_6 = arith.constant 0 : index
    %c0_7 = arith.constant 0 : index
    %6 = vector.load %arg3[%c0_5, %c0_6, %c0_7] : memref<1x56x32xf32, #tpu.memory_space<vmem>>, vector<1x56x32xf32>
    %7 = arith.truncf %6 : vector<1x56x32xf32> to vector<1x56x32xbf16>
    %cst_8 = arith.constant dense<0.000000e+00> : vector<1x56x56xf32>
    %8 = tpu.matmul %3, %5, %cst_8 {dimension_numbers = #tpu.dot_dimension_numbers<[2], [2], [1], [1], [0, 0, 0, 1, 1, 1], [0], [0]>} : vector<1x56x32xbf16>, vector<1x56x32xbf16>, vector<1x56x56xf32> -> vector<1x56x56xf32>
    %c0_9 = arith.constant 0 : index
    %c0_10 = arith.constant 0 : index
    %c0_11 = arith.constant 0 : index
    %9 = vector.load %arg4[%c0_9, %c0_10, %c0_11] : memref<1x56x56xf32, #tpu.memory_space<vmem>>, vector<1x56x56xf32>
    %10 = arith.addf %8, %9 : vector<1x56x56xf32>
    %cst_12 = arith.constant dense<0xFF800000> : vector<1x56xf32>
    %11 = vector.multi_reduction <maximumf>, %10, %cst_12 [2] : vector<1x56x56xf32> to vector<1x56xf32>
    %12 = vector.shape_cast %11 : vector<1x56xf32> to vector<1x56x1xf32>
    %13 = vector.broadcast %12 : vector<1x56x1xf32> to vector<1x56x56xf32>
    %14 = arith.subf %10, %13 : vector<1x56x56xf32>
    %15 = math.exp %14 : vector<1x56x56xf32>
    %cst_13 = arith.constant dense<0.000000e+00> : vector<1x56xf32>
    %16 = vector.multi_reduction <add>, %15, %cst_13 [2] : vector<1x56x56xf32> to vector<1x56xf32>
    %17 = vector.shape_cast %16 : vector<1x56xf32> to vector<1x56x1xf32>
    %18 = arith.truncf %15 : vector<1x56x56xf32> to vector<1x56x56xbf16>
    %cst_14 = arith.constant dense<0.000000e+00> : vector<1x56x32xf32>
    %19 = tpu.matmul %18, %7, %cst_14 {dimension_numbers = #tpu.dot_dimension_numbers<[2], [1], [1], [2], [0, 0, 0, 1, 1, 2], [0], [0]>} : vector<1x56x56xbf16>, vector<1x56x32xbf16>, vector<1x56x32xf32> -> vector<1x56x32xf32>
    %20 = tpu.reciprocal %17 {approx = true} : vector<1x56x1xf32> -> vector<1x56x1xf32>
    %21 = vector.broadcast %20 : vector<1x56x1xf32> to vector<1x56x32xf32>
    %22 = arith.mulf %19, %21 : vector<1x56x32xf32>
    %c0_15 = arith.constant 0 : index
    %c0_16 = arith.constant 0 : index
    %c0_17 = arith.constant 0 : index
    %23 = vector.load %arg5[%c0_15, %c0_16, %c0_17] : memref<1x56x32xf32, #tpu.memory_space<vmem>>, vector<1x56x32xf32>
    tpu.vector_store %arg5[%c0_15, %c0_16, %c0_17], %22 {strides = array<i32>} : memref<1x56x32xf32, #tpu.memory_space<vmem>>, vector<1x56x32xf32>,
    return
  }
  func.func @transform_0(%arg0: i32) -> (i32, i32, i32) {
    %c0_i32 = arith.constant 0 : i32
    %c0_i32_0 = arith.constant 0 : i32
    %c0_i32_1 = arith.constant 0 : i32
    return %arg0, %c0_i32, %c0_i32_0 : i32, i32, i32
  }
  func.func @transform_1(%arg0: i32) -> (i32, i32, i32) {
    %c0_i32 = arith.constant 0 : i32
    %c0_i32_0 = arith.constant 0 : i32
    %c0_i32_1 = arith.constant 0 : i32
    return %arg0, %c0_i32, %c0_i32_0 : i32, i32, i32
  }
  func.func @transform_2(%arg0: i32) -> (i32, i32, i32) {
    %c0_i32 = arith.constant 0 : i32
    %c0_i32_0 = arith.constant 0 : i32
    %c0_i32_1 = arith.constant 0 : i32
    return %arg0, %c0_i32, %c0_i32_0 : i32, i32, i32
  }
  func.func @transform_3(%arg0: i32) -> (i32, i32, i32) {
    %c0_i32 = arith.constant 0 : i32
    %c0_i32_0 = arith.constant 0 : i32
    %c0_i32_1 = arith.constant 0 : i32
    %c0_i32_2 = arith.constant 0 : i32
    return %c0_i32, %c0_i32_0, %c0_i32_1 : i32, i32, i32
  }
  func.func @transform_4(%arg0: i32) -> (i32, i32, i32) {
    %c0_i32 = arith.constant 0 : i32
    %c0_i32_0 = arith.constant 0 : i32
    %c0_i32_1 = arith.constant 0 : i32
    return %arg0, %c0_i32, %c0_i32_0 : i32, i32, i32
  }
}

</mosaic_0001>

<llo_original>
// kernel: tpu_custom_call.1
$region0: #{tpu_custom_call.1}
  #allocation0 [shape = 'u32[]', space=smem, size = 0x4, offset = 0x4, fixed_abs, tag = 'smem constant byte address 0x4 - core index']
  #allocation1 [shape = 'u32[144,128]{1,0:T(1,128)}', space=vmem, size = 0x12000, scoped, tag = 'internal scratch']
  %s0 = inlined_call_operand.vmem [shape: f32[2,56,32], index: 0, kind: input, shape index: {}]
  %s1 = inlined_call_operand.vmem [shape: f32[2,56,32], index: 1, kind: input, shape index: {}]
  %s2 = inlined_call_operand.vmem [shape: f32[2,56,32], index: 2, kind: input, shape index: {}]
  %s3 = inlined_call_operand.vmem [shape: f32[1,56,56], index: 3, kind: input, shape index: {}]
  %s4 = inlined_call_operand.vmem [shape: f32[2,56,32], index: 4, kind: output, shape index: {}]
  %s5 = sld [smem:[#allocation0]]
  $region49: #{tpu_custom_call.1} parent=0
    _
  %s7 = ssub.s32 1, %s5
  %s8 = scalar_select 0, %s7, %s5
  loop: start=0, step=1, limit=4
  $region2: #{tpu_custom_call.1} parent=0 // loop_pre_header
    _
  $region3: #{tpu_custom_call.1} parent=0 // loop_header
    %s10 = sphi 0, %s14
    %p11 = scmp.ge.s32.totalorder %s10, 4
    %s20 = sphi 0, %s22
    %s23 = sphi 0, %s20
    %s24 = sphi 0, %s23
    %s40 = sphi 0, %s24
    %s46 = sphi 0, %s48
    %s49 = sphi 0, %s46
    %s50 = sphi 0, %s49
    %s66 = sphi 0, %s50
    %s72 = sphi 0, %s74
    %s75 = sphi 0, %s72
    %s76 = sphi 0, %s75
    %s92 = sphi 0, %s76
    %s96 = sphi 0, %s96
    %s98 = sphi 0, %s96
    %s99 = sphi 0, %s98
    %s113 = sphi 0, %s99
    %s119 = sphi 0, %s121
    %s122 = sphi 0, %s119
    %s123 = sphi 0, %s122
    %s139 = sphi 0, %s123
  $region4: #{tpu_custom_call.1} parent=0 // loop_header_branch
    %13 = sbr.rel (%p11) target = $region8
  $region5: #{tpu_custom_call.1} parent=0 // loop_body
    %s15 = ssub.s32 %s10, 1
    %s16 = ssub.s32 %s10, 2
    %s17 = sadd.s32 %s10, 1
    %s18 = ssub.s32 %s10, %s17
    %p19 = scmp.eq.s32.totalorder %s18, 0
    %s21 = sadd.s32 %s20, 1
    %s22 = scalar_select %p19, %s20, %s21
    %p25 = pneg %p19
    %p26 = scmp.eq.s32.totalorder %s10, 1
    %p27 = por %p25, %p26
    %p28 = scmp.ne.s32.totalorder %s20, %s23
    %p29 = scmp.eq.s32.totalorder %s10, 0
    %p30 = por %p28, %p29
    %p31 = scmp.ne.s32.totalorder %s20, %s23
    %p32 = scmp.eq.s32.totalorder %s15, 1
    %p33 = por %p31, %p32
    %p34 = scmp.ne.s32.totalorder %s23, %s24
    %p35 = scmp.eq.s32.totalorder %s15, 0
    %p36 = por %p34, %p35
    %p37 = scmp.ne.s32.totalorder %s23, %s24
    %p38 = scmp.eq.s32.totalorder %s16, 1
    %p39 = por %p37, %p38
    %p41 = scmp.ne.s32.totalorder %s24, %s40
    %p42 = scmp.eq.s32.totalorder %s16, 0
    %p43 = por %p41, %p42
    %s44 = ssub.s32 %s10, %s17
    %p45 = scmp.eq.s32.totalorder %s44, 0
    %s47 = sadd.s32 %s46, 1
    %s48 = scalar_select %p45, %s46, %s47
    %p51 = pneg %p45
    %p52 = scmp.eq.s32.totalorder %s10, 1
    %p53 = por %p51, %p52
    %p54 = scmp.ne.s32.totalorder %s46, %s49
    %p55 = scmp.eq.s32.totalorder %s10, 0
    %p56 = por %p54, %p55
    %p57 = scmp.ne.s32.totalorder %s46, %s49
    %p58 = scmp.eq.s32.totalorder %s15, 1
    %p59 = por %p57, %p58
    %p60 = scmp.ne.s32.totalorder %s49, %s50
    %p61 = scmp.eq.s32.totalorder %s15, 0
    %p62 = por %p60, %p61
    %p63 = scmp.ne.s32.totalorder %s49, %s50
    %p64 = scmp.eq.s32.totalorder %s16, 1
    %p65 = por %p63, %p64
    %p67 = scmp.ne.s32.totalorder %s50, %s66
    %p68 = scmp.eq.s32.totalorder %s16, 0
    %p69 = por %p67, %p68
    %s70 = ssub.s32 %s10, %s17
    %p71 = scmp.eq.s32.totalorder %s70, 0
    %s73 = sadd.s32 %s72, 1
    %s74 = scalar_select %p71, %s72, %s73
    %p77 = pneg %p71
    %p78 = scmp.eq.s32.totalorder %s10, 1
    %p79 = por %p77, %p78
    %p80 = scmp.ne.s32.totalorder %s72, %s75
    %p81 = scmp.eq.s32.totalorder %s10, 0
    %p82 = por %p80, %p81
    %p83 = scmp.ne.s32.totalorder %s72, %s75
    %p84 = scmp.eq.s32.totalorder %s15, 1
    %p85 = por %p83, %p84
    %p86 = scmp.ne.s32.totalorder %s75, %s76
    %p87 = scmp.eq.s32.totalorder %s15, 0
    %p88 = por %p86, %p87
    %p89 = scmp.ne.s32.totalorder %s75, %s76
    %p90 = scmp.eq.s32.totalorder %s16, 1
    %p91 = por %p89, %p90
    %p93 = scmp.ne.s32.totalorder %s76, %s92
    %p94 = scmp.eq.s32.totalorder %s16, 0
    %p95 = por %p93, %p94
    %s97 = sadd.s32 %s96, 1
    %p100 = scmp.eq.s32.totalorder %s10, 1
    %p101 = scmp.ne.s32.totalorder %s96, %s98
    %p102 = scmp.eq.s32.totalorder %s10, 0
    %p103 = por %p101, %p102
    %p104 = scmp.ne.s32.totalorder %s96, %s98
    %p105 = scmp.eq.s32.totalorder %s15, 1
    %p106 = por %p104, %p105
    %p107 = scmp.ne.s32.totalorder %s98, %s99
    %p108 = scmp.eq.s32.totalorder %s15, 0
    %p109 = por %p107, %p108
    %p110 = scmp.ne.s32.totalorder %s98, %s99
    %p111 = scmp.eq.s32.totalorder %s16, 1
    %p112 = por %p110, %p111
    %p114 = scmp.ne.s32.totalorder %s99, %s113
    %p115 = scmp.eq.s32.totalorder %s16, 0
    %p116 = por %p114, %p115
    %s117 = ssub.s32 %s10, %s17
    %p118 = scmp.eq.s32.totalorder %s117, 0
    %s120 = sadd.s32 %s119, 1
    %s121 = scalar_select %p118, %s119, %s120
    %p124 = pneg %p118
    %p125 = scmp.eq.s32.totalorder %s10, 1
    %p126 = por %p124, %p125
    %p127 = scmp.ne.s32.totalorder %s119, %s122
    %p128 = scmp.eq.s32.totalorder %s10, 0
    %p129 = por %p127, %p128
    %p130 = scmp.ne.s32.totalorder %s119, %s122
    %p131 = scmp.eq.s32.totalorder %s15, 1
    %p132 = por %p130, %p131
    %p133 = scmp.ne.s32.totalorder %s122, %s123
    %p134 = scmp.eq.s32.totalorder %s15, 0
    %p135 = por %p133, %p134
    %p136 = scmp.ne.s32.totalorder %s122, %s123
    %p137 = scmp.eq.s32.totalorder %s16, 1
    %p138 = por %p136, %p137
    %p140 = scmp.ne.s32.totalorder %s123, %s139
    %p141 = scmp.eq.s32.totalorder %s16, 0
    %p142 = por %p140, %p141
    %p143 = scmp.le.s32.totalorder 1, %s10
    %p144 = scmp.lt.s32.totalorder %s10, 3
    %p145 = pnand %p143, %p144
    %p146 = pneg %p145
    // Predicated region
    $region9: #{tpu_custom_call.1} parent=5 // pred_check
      _
    $region10: #{tpu_custom_call.1} parent=5 // pred_check_branch
      %148 = sbr.rel (%p145) target = $region12
    $region11: #{tpu_custom_call.1} parent=5 // pred_region
      %s149 = ssub.s32 %s10, 1
      // Predicated region
      $region13: #{tpu_custom_call.1} parent=11 // pred_check
        %p150 = pneg %p109
      $region14: #{tpu_custom_call.1} parent=11 // pred_check_branch
        %152 = sbr.rel (%p150) target = $region16
      $region15: #{tpu_custom_call.1} parent=11 // pred_region
        _
      $region16: #{tpu_custom_call.1} parent=11 // pred_fallthru
        _
    $region12: #{tpu_custom_call.1} parent=5 // pred_fallthru
      _
    %p153 = scmp.lt.s32.totalorder %s10, 2
    // Predicated region
    $region17: #{tpu_custom_call.1} parent=5 // pred_check
      %p154 = pneg %p153
    $region18: #{tpu_custom_call.1} parent=5 // pred_check_branch
      %156 = sbr.rel (%p154) target = $region20
    $region19: #{tpu_custom_call.1} parent=5 // pred_region
      // Predicated region
      $region21: #{tpu_custom_call.1} parent=19 // pred_check
        %p157 = pneg %p30
      $region22: #{tpu_custom_call.1} parent=19 // pred_check_branch
        %159 = sbr.rel (%p157) target = $region24
      $region23: #{tpu_custom_call.1} parent=19 // pred_region
        %p160 = scmp.lt.s32.totalorder %s10, 1
        %s161 = scalar_select %p160, %s10, 1
        %s162 = smul.addr %s161, 7
        %s163 = smul.addr %s162, 8
        %s164 = scalar_lea.vmem %s0, %s163
      $region24: #{tpu_custom_call.1} parent=19 // pred_fallthru
        _
      // Predicated region
      $region25: #{tpu_custom_call.1} parent=19 // pred_check
        %p165 = pneg %p56
      $region26: #{tpu_custom_call.1} parent=19 // pred_check_branch
        %167 = sbr.rel (%p165) target = $region28
      $region27: #{tpu_custom_call.1} parent=19 // pred_region
        %p168 = scmp.lt.s32.totalorder %s10, 1
        %s169 = scalar_select %p168, %s10, 1
        %s170 = smul.addr %s169, 7
        %s171 = smul.addr %s170, 8
        %s172 = scalar_lea.vmem %s1, %s171
      $region28: #{tpu_custom_call.1} parent=19 // pred_fallthru
        _
      // Predicated region
      $region29: #{tpu_custom_call.1} parent=19 // pred_check
        %p173 = pneg %p82
      $region30: #{tpu_custom_call.1} parent=19 // pred_check_branch
        %175 = sbr.rel (%p173) target = $region32
      $region31: #{tpu_custom_call.1} parent=19 // pred_region
        %p176 = scmp.lt.s32.totalorder %s10, 1
        %s177 = scalar_select %p176, %s10, 1
        %s178 = smul.addr %s177, 7
        %s179 = smul.addr %s178, 8
        %s180 = scalar_lea.vmem %s2, %s179
      $region32: #{tpu_custom_call.1} parent=19 // pred_fallthru
        _
    $region20: #{tpu_custom_call.1} parent=5 // pred_fallthru
      _
    %p181 = scmp.le.s32.totalorder 1, %s10
    %p182 = scmp.lt.s32.totalorder %s10, 3
    %p183 = pnand %p181, %p182
    %p184 = pneg %p183
    // Predicated region
    $region33: #{tpu_custom_call.1} parent=5 // pred_check
      _
    $region34: #{tpu_custom_call.1} parent=5 // pred_check_branch
      %186 = sbr.rel (%p183) target = $region36
    $region35: #{tpu_custom_call.1} parent=5 // pred_region
      %s187 = ssub.s32 %s10, 1
      %p188 = scmp.lt.s32.totalorder %s15, 1
      %s189 = scalar_select %p188, %s15, 1
      %s190 = smul.addr %s189, 7
      %s191 = smul.addr %s190, 8
      %s192 = scalar_lea.vmem %s0, %s191
      %p193 = pneg %p36
      %p194 = pneg %p33
      %p195 = scmp.lt.s32.totalorder %s15, 1
      %s196 = scalar_select %p195, %s15, 1
      %s197 = smul.addr %s196, 7
      %s198 = smul.addr %s197, 8
      %s199 = scalar_lea.vmem %s1, %s198
      %p200 = pneg %p62
      %p201 = pneg %p59
      %p202 = scmp.lt.s32.totalorder %s15, 1
      %s203 = scalar_select %p202, %s15, 1
      %s204 = smul.addr %s203, 7
      %s205 = smul.addr %s204, 8
      %s206 = scalar_lea.vmem %s2, %s205
      %p207 = pneg %p88
      %p208 = pneg %p85
      %p209 = pneg %p109
      %p210 = pneg %p106
      %p211 = pneg %p135
      %p212 = pneg %p132
      %p213 = scmp.lt.s32.totalorder %s15, 1
      %s214 = scalar_select %p213, %s15, 1
      %s215 = smul.addr %s214, 7
      %s216 = smul.addr %s215, 8
      %s217 = scalar_lea.vmem %s4, %s216
      %p218 = scmp.lt.s32.totalorder %s15, 1
      %s219 = scalar_select %p218, %s15, 1
      %s220 = smul.addr %s219, 7
      %s221 = smul.addr %s220, 8
      %s222 = scalar_lea.vmem %s0, %s221
      %p223 = scmp.lt.s32.totalorder %s15, 1
      %s224 = scalar_select %p223, %s15, 1
      %s225 = smul.addr %s224, 7
      %s226 = smul.addr %s225, 8
      %s227 = scalar_lea.vmem %s1, %s226
      %p228 = scmp.lt.s32.totalorder %s15, 1
      %s229 = scalar_select %p228, %s15, 1
      %s230 = smul.addr %s229, 7
      %s231 = smul.addr %s230, 8
      %s232 = scalar_lea.vmem %s2, %s231
      %p233 = scmp.lt.s32.totalorder %s15, 1
      %s234 = scalar_select %p233, %s15, 1
      %s235 = smul.addr %s234, 7
      %s236 = smul.addr %s235, 8
      %s237 = scalar_lea.vmem %s4, %s236
      %v239 = vld [vmem:[%s222] sm:$0xff]
      %v240 = vld [vmem:[%s222 + $0x8] sm:$0xff]
      %v241 = vld [vmem:[%s222 + $0x10] sm:$0xff]
      %v242 = vld [vmem:[%s222 + $0x18] sm:$0xff]
      %v243 = vld [vmem:[%s222 + $0x20] sm:$0xff]
      %v244 = vld [vmem:[%s222 + $0x28] sm:$0xff]
      %v245 = vld [vmem:[%s222 + $0x30] sm:$0xff]
      %v246 = vmul.f32 %v239, 0.17677669
      %v247 = vmul.f32 %v240, 0.17677669
      %v248 = vmul.f32 %v241, 0.17677669
      %v249 = vmul.f32 %v242, 0.17677669
      %v250 = vmul.f32 %v243, 0.17677669
      %v251 = vmul.f32 %v244, 0.17677669
      %v252 = vmul.f32 %v245, 0.17677669
      %v253 = vpack.c.bf16 %v247, %v246
      %v254 = vpack.c.bf16 %v249, %v248
      %v255 = vpack.c.bf16 %v251, %v250
      %v256 = vpack.c.bf16 %v252, %v252
      %v257 = vld [vmem:[%s227] sm:$0xff]
      %v258 = vld [vmem:[%s227 + $0x8] sm:$0xff]
      %v259 = vld [vmem:[%s227 + $0x10] sm:$0xff]
      %v260 = vld [vmem:[%s227 + $0x18] sm:$0xff]
      %v261 = vld [vmem:[%s227 + $0x20] sm:$0xff]
      %v262 = vld [vmem:[%s227 + $0x28] sm:$0xff]
      %v263 = vld [vmem:[%s227 + $0x30] sm:$0xff]
      %v264 = vpack.c.bf16 %v258, %v257
      %v265 = vpack.c.bf16 %v260, %v259
      %v266 = vpack.c.bf16 %v262, %v261
      %v267 = vpack.c.bf16 %v263, %v263
      %v268 = vld [vmem:[%s232] sm:$0xff]
      %v269 = vld [vmem:[%s232 + $0x8] sm:$0xff]
      %v270 = vld [vmem:[%s232 + $0x10] sm:$0xff]
      %v271 = vld [vmem:[%s232 + $0x18] sm:$0xff]
      %v272 = vld [vmem:[%s232 + $0x20] sm:$0xff]
      %v273 = vld [vmem:[%s232 + $0x28] sm:$0xff]
      %v274 = vld [vmem:[%s232 + $0x30] sm:$0xff]
      %v275 = vpack.c.bf16 %v269, %v268
      %v276 = vpack.c.bf16 %v271, %v270
      %v277 = vpack.c.bf16 %v273, %v272
      %v278 = vpack.c.bf16 %v274, %v274
      %v279 = vld [vmem:[%s3] sm:$0xff]
      %v280 = vld [vmem:[%s3 + $0x8] sm:$0xff]
      %v281 = vld [vmem:[%s3 + $0x10] sm:$0xff]
      %v282 = vld [vmem:[%s3 + $0x18] sm:$0xff]
      %v283 = vld [vmem:[%s3 + $0x20] sm:$0xff]
      %v284 = vld [vmem:[%s3 + $0x28] sm:$0xff]
      %v285 = vld [vmem:[%s3 + $0x30] sm:$0xff]
      %vm286 = vcmask 261120
      %v288 = vsel %vm286, %v253, 0
      %v291 = vsel %vm286, %v254, 0
      %v294 = vsel %vm286, %v255, 0
      %v297 = vsel %vm286, %v256, 0
      %v300 = vsel %vm286, %v264, 0
      %v303 = vsel %vm286, %v265, 0
      %v306 = vsel %vm286, %v266, 0
      %v309 = vsel %vm286, %v267, 0
      %311 = vmatprep.subr.bf16.mxu0 0
      %312 = vmatpush1.bf16.xpose.msra.mxu0 0
      %313 = vmatprep.subr.bf16.mxu0 0
      %314 = vmatpush1.bf16.xpose.msra.mxu0 0
      %315 = vmatprep.subr.bf16.mxu0 0
      %316 = vmatpush1.bf16.xpose.msra.mxu0 0
      %317 = vmatprep.subr.bf16.mxu0 0
      %318 = vmatpush1.bf16.xpose.msra.mxu0 0
      %319 = vmatprep.subr.bf16.mxu0 0
      %320 = vmatpush1.bf16.xpose.msra.mxu0 %v309
      %321 = vmatprep.subr.bf16.mxu0 0
      %322 = vmatpush1.bf16.xpose.msra.mxu0 %v306
      %323 = vmatprep.subr.bf16.mxu0 0
      %324 = vmatpush1.bf16.xpose.msra.mxu0 %v303
      %325 = vmatprep.subr.bf16.mxu0 0
      %326 = vmatpush1.bf16.xpose.msra.mxu0 %v300
      %327 = vmatprep.subr.bf16.mxu0 0
      %328 = vmatpush2.bf16.xpose.msra.mxu0 0
      %329 = vmatprep.subr.bf16.mxu0 0
      %330 = vmatpush2.bf16.xpose.msra.mxu0 0
      %331 = vmatprep.subr.bf16.mxu0 0
      %332 = vmatpush2.bf16.xpose.msra.mxu0 0
      %333 = vmatprep.subr.bf16.mxu0 0
      %334 = vmatpush2.bf16.xpose.msra.mxu0 0
      %335 = vmatprep.subr.bf16.mxu0 0
      %336 = vmatpush2.bf16.xpose.msra.mxu0 0
      %337 = vmatprep.subr.bf16.mxu0 0
      %338 = vmatpush2.bf16.xpose.msra.mxu0 0
      %339 = vmatprep.subr.bf16.mxu0 0
      %340 = vmatpush2.bf16.xpose.msra.mxu0 0
      %341 = vmatprep.subr.bf16.mxu0 0
      %342 = vmatpush2.bf16.xpose.msra.mxu0 0
      %343 = vmatprep.mubr.bf16.mxu0 0
      %344 = vmatmul.mubr.bf16.gmra.mxu0 %v288
      %v345 = vpop.f32.mrf.mxu0
      %v346 = vadd.f32 %v279, %v345
      %v347 = vpop.f32.mrf.mxu0
      %v348 = vpop.f32.mrf.mxu0
      %v349 = vadd.f32 %v280, %v348
      %v350 = vpop.f32.mrf.mxu0
      %351 = vmatprep.mubr.bf16.mxu0 0
      %352 = vmatmul.mubr.bf16.gmra.mxu0 %v291
      %v353 = vpop.f32.mrf.mxu0
      %v354 = vadd.f32 %v281, %v353
      %v355 = vpop.f32.mrf.mxu0
      %v356 = vpop.f32.mrf.mxu0
      %v357 = vadd.f32 %v282, %v356
      %v358 = vpop.f32.mrf.mxu0
      %359 = vmatprep.mubr.bf16.mxu0 0
      %360 = vmatmul.mubr.bf16.gmra.mxu0 %v294
      %v361 = vpop.f32.mrf.mxu0
      %v362 = vadd.f32 %v283, %v361
      %v363 = vpop.f32.mrf.mxu0
      %v364 = vpop.f32.mrf.mxu0
      %v365 = vadd.f32 %v284, %v364
      %v366 = vpop.f32.mrf.mxu0
      %367 = vmatprep.mubr.bf16.mxu0 0
      %368 = vmatmul.mubr.bf16.gmra.mxu0 %v297
      %v369 = vpop.f32.mrf.mxu0
      %v370 = vadd.f32 %v285, %v369
      %v371 = vpop.f32.mrf.mxu0
      %v372 = vpop.f32.mrf.mxu0
      %v373 = vpop.f32.mrf.mxu0
      %374 = vdwg.mxu0
      %vm375 = vcmask 457728
      %v376 = vsel %vm375, %v346, -inf
      %377 = vmax.xlane.f32.xlu0 %v376
      %v378 = vpop.xlane.xlu0 %377
      %v379 = vsel %vm375, %v349, -inf
      %380 = vmax.xlane.f32.xlu0 %v379
      %v381 = vpop.xlane.xlu0 %380
      %v382 = vsel %vm375, %v354, -inf
      %383 = vmax.xlane.f32.xlu0 %v382
      %v384 = vpop.xlane.xlu0 %383
      %v385 = vsel %vm375, %v357, -inf
      %386 = vmax.xlane.f32.xlu0 %v385
      %v387 = vpop.xlane.xlu0 %386
      %v388 = vsel %vm375, %v362, -inf
      %389 = vmax.xlane.f32.xlu0 %v388
      %v390 = vpop.xlane.xlu0 %389
      %v391 = vsel %vm375, %v365, -inf
      %392 = vmax.xlane.f32.xlu0 %v391
      %v393 = vpop.xlane.xlu0 %392
      %v394 = vsel %vm375, %v370, -inf
      %395 = vmax.xlane.f32.xlu0 %v394
      %v396 = vpop.xlane.xlu0 %395
      %v397 = vsub.f32 %v346, %v378
      %v398 = vsub.f32 %v349, %v381
      %v399 = vsub.f32 %v354, %v384
      %v400 = vsub.f32 %v357, %v387
      %v401 = vsub.f32 %v362, %v390
      %v402 = vsub.f32 %v365, %v393
      %v403 = vsub.f32 %v370, %v396
      %v404 = vmul.f32 %v397, 1.442695
      %v405 = vpow.pop %v404
      %v406 = vmul.f32 %v398, 1.442695
      %v407 = vpow.pop %v406
      %v408 = vmul.f32 %v399, 1.442695
      %v409 = vpow.pop %v408
      %v410 = vmul.f32 %v400, 1.442695
      %v411 = vpow.pop %v410
      %v412 = vmul.f32 %v401, 1.442695
      %v413 = vpow.pop %v412
      %v414 = vmul.f32 %v402, 1.442695
      %v415 = vpow.pop %v414
      %v416 = vmul.f32 %v403, 1.442695
      %v417 = vpow.pop %v416
      %v418 = vsel %vm375, %v405, 0.0
      %419 = vadd.xlane.f32.xlu0 %v418
      %v420 = vpop.xlane.xlu0 %419
      %v421 = vsel %vm375, %v407, 0.0
      %422 = vadd.xlane.f32.xlu0 %v421
      %v423 = vpop.xlane.xlu0 %422
      %v424 = vsel %vm375, %v409, 0.0
      %425 = vadd.xlane.f32.xlu0 %v424
      %v426 = vpop.xlane.xlu0 %425
      %v427 = vsel %vm375, %v411, 0.0
      %428 = vadd.xlane.f32.xlu0 %v427
      %v429 = vpop.xlane.xlu0 %428
      %v430 = vsel %vm375, %v413, 0.0
      %431 = vadd.xlane.f32.xlu0 %v430
      %v432 = vpop.xlane.xlu0 %431
      %v433 = vsel %vm375, %v415, 0.0
      %434 = vadd.xlane.f32.xlu0 %v433
      %v435 = vpop.xlane.xlu0 %434
      %v436 = vsel %vm375, %v417, 0.0
      %437 = vadd.xlane.f32.xlu0 %v436
      %v438 = vpop.xlane.xlu0 %437
      %v439 = vpack.c.bf16 %v407, %v405
      %v440 = vpack.c.bf16 %v411, %v409
      %v441 = vpack.c.bf16 %v415, %v413
      %v442 = vpack.c.bf16 %v417, %v417
      %v444 = vsel %vm375, %v439, 0
      %v447 = vsel %vm375, %v440, 0
      %v450 = vsel %vm375, %v441, 0
      %v453 = vsel %vm375, %v442, 0
      %vm455 = vcmask 1043456
      %v457 = vsel %vm455, %v278, 0
      %459 = vmatprep.subr.bf16.mxu0 0
      %460 = vmatpush1.bf16.msra.mxu0 0
      %461 = vmatprep.subr.bf16.mxu0 0
      %462 = vmatpush1.bf16.msra.mxu0 0
      %463 = vmatprep.subr.bf16.mxu0 0
      %464 = vmatpush1.bf16.msra.mxu0 0
      %465 = vmatprep.subr.bf16.mxu0 0
      %466 = vmatpush1.bf16.msra.mxu0 0
      %467 = vmatprep.subr.bf16.mxu0 0
      %468 = vmatpush1.bf16.msra.mxu0 %v457
      %469 = vmatprep.subr.bf16.mxu0 0
      %470 = vmatpush1.bf16.msra.mxu0 %v277
      %471 = vmatprep.subr.bf16.mxu0 0
      %472 = vmatpush1.bf16.msra.mxu0 %v276
      %473 = vmatprep.subr.bf16.mxu0 0
      %474 = vmatpush1.bf16.msra.mxu0 %v275
      %475 = vmatprep.subr.bf16.mxu0 0
      %476 = vmatpush2.bf16.msra.mxu0 0
      %477 = vmatprep.subr.bf16.mxu0 0
      %478 = vmatpush2.bf16.msra.mxu0 0
      %479 = vmatprep.subr.bf16.mxu0 0
      %480 = vmatpush2.bf16.msra.mxu0 0
      %481 = vmatprep.subr.bf16.mxu0 0
      %482 = vmatpush2.bf16.msra.mxu0 0
      %483 = vmatprep.subr.bf16.mxu0 0
      %484 = vmatpush2.bf16.msra.mxu0 0
      %485 = vmatprep.subr.bf16.mxu0 0
      %486 = vmatpush2.bf16.msra.mxu0 0
      %487 = vmatprep.subr.bf16.mxu0 0
      %488 = vmatpush2.bf16.msra.mxu0 0
      %489 = vmatprep.subr.bf16.mxu0 0
      %490 = vmatpush2.bf16.msra.mxu0 0
      %491 = vmatprep.mubr.bf16.mxu0 0
      %492 = vmatmul.mubr.bf16.gmra.mxu0 %v444
      %v493 = vpop.f32.mrf.mxu0
      %v494 = vadd.f32 0.0, %v493
      %v495 = vpop.f32.mrf.mxu0
      %v496 = vpop.f32.mrf.mxu0
      %v497 = vadd.f32 0.0, %v496
      %v498 = vpop.f32.mrf.mxu0
      %499 = vmatprep.mubr.bf16.mxu0 0
      %500 = vmatmul.mubr.bf16.gmra.mxu0 %v447
      %v501 = vpop.f32.mrf.mxu0
      %v502 = vadd.f32 0.0, %v501
      %v503 = vpop.f32.mrf.mxu0
      %v504 = vpop.f32.mrf.mxu0
      %v505 = vadd.f32 0.0, %v504
      %v506 = vpop.f32.mrf.mxu0
      %507 = vmatprep.mubr.bf16.mxu0 0
      %508 = vmatmul.mubr.bf16.gmra.mxu0 %v450
      %v509 = vpop.f32.mrf.mxu0
      %v510 = vadd.f32 0.0, %v509
      %v511 = vpop.f32.mrf.mxu0
      %v512 = vpop.f32.mrf.mxu0
      %v513 = vadd.f32 0.0, %v512
      %v514 = vpop.f32.mrf.mxu0
      %515 = vmatprep.mubr.bf16.mxu0 0
      %516 = vmatmul.mubr.bf16.gmra.mxu0 %v453
      %v517 = vpop.f32.mrf.mxu0
      %v518 = vadd.f32 0.0, %v517
      %v519 = vpop.f32.mrf.mxu0
      %v520 = vpop.f32.mrf.mxu0
      %v521 = vpop.f32.mrf.mxu0
      %522 = vdwg.mxu0
      %v523 = vrcp.pop %v420
      %v524 = vrcp.pop %v423
      %v525 = vrcp.pop %v426
      %v526 = vrcp.pop %v429
      %v527 = vrcp.pop %v432
      %v528 = vrcp.pop %v435
      %v529 = vrcp.pop %v438
      %v530 = vmul.f32 %v494, %v523
      %v531 = vmul.f32 %v497, %v524
      %v532 = vmul.f32 %v502, %v525
      %v533 = vmul.f32 %v505, %v526
      %v534 = vmul.f32 %v510, %v527
      %v535 = vmul.f32 %v513, %v528
      %v536 = vmul.f32 %v518, %v529
      %537 = vst.msk [vmem:[%s237] sm:$0xff] %vm286, %v530
      %538 = vst.msk [vmem:[%s237 + $0x8] sm:$0xff] %vm286, %v531
      %539 = vst.msk [vmem:[%s237 + $0x10] sm:$0xff] %vm286, %v532
      %540 = vst.msk [vmem:[%s237 + $0x18] sm:$0xff] %vm286, %v533
      %541 = vst.msk [vmem:[%s237 + $0x20] sm:$0xff] %vm286, %v534
      %542 = vst.msk [vmem:[%s237 + $0x28] sm:$0xff] %vm286, %v535
      %543 = vst.msk [vmem:[%s237 + $0x30] sm:$0xff] %vm286, %v536
      %p544 = scmp.lt.s32.totalorder %s15, 1
      %s545 = scalar_select %p544, %s15, 1
      %s546 = smul.addr %s545, 7
      %s547 = smul.addr %s546, 8
      %s548 = scalar_lea.vmem %s4, %s547
      // Predicated region
      $region37: #{tpu_custom_call.1} parent=35 // pred_check
        %p549 = pneg %p132
      $region38: #{tpu_custom_call.1} parent=35 // pred_check_branch
        %551 = sbr.rel (%p549) target = $region40
      $region39: #{tpu_custom_call.1} parent=35 // pred_region
        _
      $region40: #{tpu_custom_call.1} parent=35 // pred_fallthru
        _
    $region36: #{tpu_custom_call.1} parent=5 // pred_fallthru
      _
    %p552 = scmp.le.s32.totalorder 2, %s10
    // Predicated region
    $region41: #{tpu_custom_call.1} parent=5 // pred_check
      %p553 = pneg %p552
    $region42: #{tpu_custom_call.1} parent=5 // pred_check_branch
      %555 = sbr.rel (%p553) target = $region44
    $region43: #{tpu_custom_call.1} parent=5 // pred_region
      %s556 = ssub.s32 %s10, 2
      // Predicated region
      $region45: #{tpu_custom_call.1} parent=43 // pred_check
        %p557 = pneg %p138
      $region46: #{tpu_custom_call.1} parent=43 // pred_check_branch
        %559 = sbr.rel (%p557) target = $region48
      $region47: #{tpu_custom_call.1} parent=43 // pred_region
        %p560 = scmp.lt.s32.totalorder %s16, 1
        %s561 = scalar_select %p560, %s16, 1
        %s562 = smul.addr %s561, 7
        %s563 = smul.addr %s562, 8
        %s564 = scalar_lea.vmem %s4, %s563
      $region48: #{tpu_custom_call.1} parent=43 // pred_fallthru
        _
    $region44: #{tpu_custom_call.1} parent=5 // pred_fallthru
      _
  $region6: #{tpu_custom_call.1} parent=0 // loop_footer
    %s14 = sadd.s32 1, %s10
  $region7: #{tpu_custom_call.1} parent=0 // loop_footer_branch
    %9 = sbr.rel target = $region3
  $region8: #{tpu_custom_call.1} parent=0 // loop_exit
    _

</llo_original>
